<compile_context>
chip_gen: v7x
topology: tpu7x:2x2x1
jax: 0.10.0
libtpu: 0.0.40
codegen_flags: <defaults>
</compile_context>

<pallas_src>
import functools

import jax
import jax.numpy as jnp
from jax.experimental import pallas as pl
from jax.experimental.pallas import tpu as pltpu

LANES = 128        # TPU vreg lane width; class dim padded to this for compute.
SUBLANES = 8       # f32 sublane count; batch padded to a multiple of this.
BATCH_TILE = 1024  # batch tile for the gridded large-batch path.


def linear_kernel(x_ref, w_ref, b_ref, o_ref, *, classes):
    # x_ref: (TB, 32) f32        -- input activations
    # w_ref: (32, C_pad) f32     -- W.T, zero-padded on the lane (class) axis
    # b_ref: (1, C_pad) f32      -- bias, zero-padded
    # o_ref: (TB, classes) f32   -- real logits (masked store of classes lanes)
    acc = jnp.dot(x_ref[...], w_ref[...], preferred_element_type=jnp.float32)
    acc = acc + b_ref[...]                     # full-vreg VPU add
    o_ref[...] = acc[:, :classes].astype(o_ref.dtype)


def prepare_params(weight, bias):
    """One-time packing of PyTorch-style params (out,in)/(out,) into a
    pre-transposed, lane-dense (in, C_pad) weight and (1, C_pad) bias.
    Do this at init, not per forward."""
    classes, in_feat = weight.shape
    c_pad = ((classes + LANES - 1) // LANES) * LANES
    w_t = jnp.zeros((in_feat, c_pad), weight.dtype).at[:, :classes].set(weight.T)
    b_pad = jnp.zeros((1, c_pad), bias.dtype).at[0, :classes].set(bias)
    return w_t, b_pad


@functools.partial(jax.jit, static_argnames=("classes",))
def classifier_forward(x, w_t, b_pad, *, classes):
    """x: (B, 32) f32, w_t: (32, C_pad) f32, b_pad: (1, C_pad) f32."""
    B, in_feat = x.shape
    c_pad = w_t.shape[1]

    kernel = functools.partial(linear_kernel, classes=classes)

    # Sublane-align the batch so every load/store is unmasked on the row axis.
    b_run = ((B + SUBLANES - 1) // SUBLANES) * SUBLANES

    if b_run <= BATCH_TILE:
        # ---- small-batch path: whole arrays resident in VMEM, no grid ----
        if b_run != B:
            x = jnp.pad(x, ((0, b_run - B), (0, 0)))
        cost = pl.CostEstimate(
            flops=2 * b_run * in_feat * c_pad,
            transcendentals=0,
            bytes_accessed=4 * (b_run * in_feat + in_feat * c_pad + c_pad
                                + b_run * classes),
        )
        out = pl.pallas_call(
            kernel,
            out_shape=jax.ShapeDtypeStruct((b_run, classes), x.dtype),
            in_specs=[
                pl.BlockSpec(memory_space=pltpu.MemorySpace.VMEM),
                pl.BlockSpec(memory_space=pltpu.MemorySpace.VMEM),
                pl.BlockSpec(memory_space=pltpu.MemorySpace.VMEM),
            ],
            out_specs=pl.BlockSpec(memory_space=pltpu.MemorySpace.VMEM),
            cost_estimate=cost,
        )(x, w_t, b_pad)
    else:
        # ---- large-batch path: batch grid, auto double-buffered tiles ----
        tb = BATCH_TILE
        b_run = ((b_run + tb - 1) // tb) * tb
        if b_run != B:
            x = jnp.pad(x, ((0, b_run - B), (0, 0)))
        cost = pl.CostEstimate(
            flops=2 * b_run * in_feat * c_pad,
            transcendentals=0,
            bytes_accessed=4 * (b_run * in_feat + in_feat * c_pad + c_pad
                                + b_run * classes),
        )
        out = pl.pallas_call(
            kernel,
            out_shape=jax.ShapeDtypeStruct((b_run, classes), x.dtype),
            grid=(b_run // tb,),
            in_specs=[
                pl.BlockSpec((tb, in_feat), lambda i: (i, 0)),
                pl.BlockSpec((in_feat, c_pad), lambda i: (0, 0)),  # resident
                pl.BlockSpec((1, c_pad), lambda i: (0, 0)),        # resident
            ],
            out_specs=pl.BlockSpec((tb, classes), lambda i: (i, 0)),
            compiler_params=pltpu.CompilerParams(
                dimension_semantics=("parallel",),      # v7x: 2 TCs split B
                vmem_limit_bytes=16 * 1024 * 1024,      # fits v5e scoped default
            ),
            cost_estimate=cost,
        )(x, w_t, b_pad)

    if out.shape[0] != B:
        out = out[:B]
    return out


if __name__ == "__main__":
    key = jax.random.PRNGKey(0)
    k_x, k_w, k_b = jax.random.split(key, 3)

    B = 8          # small batch (sublane-aligned)
    IN = 32        # fixed by the module: nn.Linear(32, classes)
    CLASSES = 10   # animal-10 -> 10 classes

    x = jax.random.normal(k_x, (B, IN), dtype=jnp.float32)
    # deterministic synthetic params (PyTorch Linear shapes: (out, in), (out,))
    bound = 1.0 / jnp.sqrt(IN)
    weight = jax.random.uniform(k_w, (CLASSES, IN), minval=-bound, maxval=bound,
                                dtype=jnp.float32)
    bias = jax.random.uniform(k_b, (CLASSES,), minval=-bound, maxval=bound,
                              dtype=jnp.float32)

    # one-time parameter packing (pre-transpose + pad to 128 lanes)
    w_t, b_pad = prepare_params(weight, bias)

    out = classifier_forward(x, w_t, b_pad, classes=CLASSES)
    out = jax.block_until_ready(out)

    # sanity check against plain JAX reference
    ref = x @ weight.T + bias
    assert out.shape == (B, CLASSES)
    assert jnp.allclose(out, ref, atol=1e-5, rtol=1e-5)

    print("KERNEL_OK")
</pallas_src>

<mosaic_0001>
module attributes {stable_mosaic.version = 11 : i64} {
  func.func @linear_kernel(%arg0: memref<8x32xf32, #tpu.memory_space<vmem>>, %arg1: memref<32x128xf32, #tpu.memory_space<vmem>>, %arg2: memref<1x128xf32, #tpu.memory_space<vmem>>, %arg3: memref<8x10xf32, #tpu.memory_space<vmem>>) attributes {dimension_semantics = [], scalar_prefetch = 0 : i64, scratch_operands = 0 : i64, tpu.core_type = #tpu.core_type<tc>} {
    %c0 = arith.constant 0 : index
    %c0_0 = arith.constant 0 : index
    %0 = vector.load %arg0[%c0, %c0_0] : memref<8x32xf32, #tpu.memory_space<vmem>>, vector<8x32xf32>
    %c0_1 = arith.constant 0 : index
    %c0_2 = arith.constant 0 : index
    %1 = vector.load %arg1[%c0_1, %c0_2] : memref<32x128xf32, #tpu.memory_space<vmem>>, vector<32x128xf32>
    %cst = arith.constant dense<0.000000e+00> : vector<8x128xf32>
    %2 = tpu.matmul %0, %1, %cst {dimension_numbers = #tpu.dot_dimension_numbers<[1], [0], [0], [1], [0, 0, 1, 1], [], []>} : vector<8x32xf32>, vector<32x128xf32>, vector<8x128xf32> -> vector<8x128xf32>
    %c0_3 = arith.constant 0 : index
    %c0_4 = arith.constant 0 : index
    %3 = vector.load %arg2[%c0_3, %c0_4] : memref<1x128xf32, #tpu.memory_space<vmem>>, vector<1x128xf32>
    %4 = vector.broadcast %3 : vector<1x128xf32> to vector<8x128xf32>
    %5 = arith.addf %2, %4 : vector<8x128xf32>
    %6 = vector.extract_strided_slice %5 {offsets = [0, 0], sizes = [8, 10], strides = [1, 1]} : vector<8x128xf32> to vector<8x10xf32>
    %c0_5 = arith.constant 0 : index
    %c0_6 = arith.constant 0 : index
    %7 = vector.load %arg3[%c0_5, %c0_6] : memref<8x10xf32, #tpu.memory_space<vmem>>, vector<8x10xf32>
    tpu.vector_store %arg3[%c0_5, %c0_6], %6 {strides = array<i32>} : memref<8x10xf32, #tpu.memory_space<vmem>>, vector<8x10xf32>,
    return
  }
}

</mosaic_0001>

<llo_original>
// kernel: classifier_forward.1
$region0: #{classifier_forward.1}
  #allocation0 [shape = 'u32[]', space=smem, size = 0x4, offset = 0x4, fixed_abs, tag = 'smem constant byte address 0x4 - core index']
  #allocation1 [shape = 'u32[144,128]{1,0:T(1,128)}', space=vmem, size = 0x12000, scoped, tag = 'internal scratch']
  %s0 = inlined_call_operand.hbm [shape: f32[8,32], index: 0, kind: input, shape index: {}]
  %s1 = inlined_call_operand.hbm [shape: f32[32,128], index: 1, kind: input, shape index: {}]
  %s2 = inlined_call_operand.vmem [shape: f32[1,128], index: 2, kind: input, shape index: {}]
  %s3 = inlined_call_operand.hbm [shape: f32[8,10], index: 3, kind: output, shape index: {}]
  %s4 = sld [smem:[#allocation0]]
  $region30: #{classifier_forward.1} parent=0
    _
  %s6 = ssub.s32 1, %s4
  %s7 = scalar_select 0, %s6, %s4
  $region1: #{classifier_forward.1} parent=0
    #allocation2 [shape = 'u8[4096]{0}', space=vmem, size = 0x1000, scoped, tag = 'input window, operand 0, single buffered']
    #allocation3 [shape = 's32[1]{0}', space=sflag, size = 0x4, scoped, tag = 'scoped memory for classifier_forward.1']
    #allocation4 [shape = 's32[1]{0}', space=sflag, size = 0x4, scoped, tag = 'scoped memory for classifier_forward.1']
    #allocation5 [shape = 'u8[16384]{0}', space=vmem, size = 0x4000, scoped, tag = 'input window, operand 1, single buffered']
    #allocation6 [shape = 's32[1]{0}', space=sflag, size = 0x4, scoped, tag = 'scoped memory for classifier_forward.1']
    #allocation7 [shape = 'u8[4096]{0}', space=vmem, size = 0x1000, scoped, tag = 'output window, operand 0, single buffered']
    %8 = vsyncpa [#allocation3], 0
    %9 = vsyncpa [#allocation6], 0
    %10 = vsyncpa [#allocation4], 0
    // Predicated region
    $region2: #{classifier_forward.1} parent=1 // pred_check
      _
    $region3: #{classifier_forward.1} parent=1 // pred_check_branch
      %12 = sbr.rel (0) target = $region5
    $region4: #{classifier_forward.1} parent=1 // pred_region
      %s14 = ssub.s32 128, 128
      %15 = vsyncadd [#allocation3], %s14
      %s17 = sshll.u32 [#allocation2], 4
      %s18 = int_to_ptr.vmem [resolvable:$true] %s17
      %20 = dma.hbm_to_vmem [thread:$0]  %s0, 128, %s18, [#allocation3]
    $region5: #{classifier_forward.1} parent=1 // pred_fallthru
      _
    // Predicated region
    $region6: #{classifier_forward.1} parent=1 // pred_check
      _
    $region7: #{classifier_forward.1} parent=1 // pred_check_branch
      %22 = sbr.rel (0) target = $region9
    $region8: #{classifier_forward.1} parent=1 // pred_region
      %s24 = ssub.s32 512, 512
      %25 = vsyncadd [#allocation6], %s24
      %s26 = sshll.u32 [#allocation5], 4
      %s27 = int_to_ptr.vmem [resolvable:$true] %s26
      %32 = dma.hbm_to_vmem [thread:$0]  %s1, 512, %s27, [#allocation6], 128, 128, 8
    $region9: #{classifier_forward.1} parent=1 // pred_fallthru
      _
    // Predicated region
    $region10: #{classifier_forward.1} parent=1 // pred_check
      _
    $region11: #{classifier_forward.1} parent=1 // pred_check_branch
      %34 = sbr.rel (0) target = $region13
    $region12: #{classifier_forward.1} parent=1 // pred_region
      _
    $region13: #{classifier_forward.1} parent=1 // pred_fallthru
      _
    // Predicated region
    $region14: #{classifier_forward.1} parent=1 // pred_check
      _
    $region15: #{classifier_forward.1} parent=1 // pred_check_branch
      %36 = sbr.rel (0) target = $region17
    $region16: #{classifier_forward.1} parent=1 // pred_region
      %37 = dma.done [#allocation3], 128
    $region17: #{classifier_forward.1} parent=1 // pred_fallthru
      _
    // Predicated region
    $region18: #{classifier_forward.1} parent=1 // pred_check
      _
    $region19: #{classifier_forward.1} parent=1 // pred_check_branch
      %39 = sbr.rel (0) target = $region21
    $region20: #{classifier_forward.1} parent=1 // pred_region
      %40 = dma.done [#allocation6], 512
    $region21: #{classifier_forward.1} parent=1 // pred_fallthru
      _
    %v41 = vld [vmem:[#allocation2] sm:$0xff]
    %v42 = vld [vmem:[#allocation5] sm:$0xff]
    %v43 = vld [vmem:[#allocation5 + $0x8] sm:$0xff]
    %v44 = vld [vmem:[#allocation5 + $0x10] sm:$0xff]
    %v45 = vld [vmem:[#allocation5 + $0x18] sm:$0xff]
    %v46 = vld [vmem:[%s2] sm:$0x1]
    %v48 = vlaneseq
    %v49 = vshrl.u32 %v48, 7
    %v50 = vsub.s32 0, %v49
    %v51 = vrot.slane %v46, %v50
    %vm53 = vcmask 261120
    %v55 = vsel %vm53, %v41, 0
    %57 = vmatprep.subr.mxu0 0.0
    %58 = vmatpush1.msra.mxu0 %v42
    %59 = vmatprep.subr.mxu0 0.0
    %60 = vmatpush1.msra.mxu0 %v43
    %61 = vmatprep.subr.mxu0 0.0
    %62 = vmatpush1.msra.mxu0 %v44
    %63 = vmatprep.subr.mxu0 0.0
    %64 = vmatpush1.msra.mxu0 %v45
    %65 = vmatprep.subr.mxu0 0.0
    %66 = vmatpush1.msra.mxu0 0.0
    %67 = vmatprep.subr.mxu0 0.0
    %68 = vmatpush1.msra.mxu0 0.0
    %69 = vmatprep.subr.mxu0 0.0
    %70 = vmatpush1.msra.mxu0 0.0
    %71 = vmatprep.subr.mxu0 0.0
    %72 = vmatpush1.msra.mxu0 0.0
    %73 = vmatprep.subr.mxu0 0.0
    %74 = vmatpush1.msra.mxu0 0.0
    %75 = vmatprep.subr.mxu0 0.0
    %76 = vmatpush1.msra.mxu0 0.0
    %77 = vmatprep.subr.mxu0 0.0
    %78 = vmatpush1.msra.mxu0 0.0
    %79 = vmatprep.subr.mxu0 0.0
    %80 = vmatpush1.msra.mxu0 0.0
    %81 = vmatprep.subr.mxu0 0.0
    %82 = vmatpush1.msra.mxu0 0.0
    %83 = vmatprep.subr.mxu0 0.0
    %84 = vmatpush1.msra.mxu0 0.0
    %85 = vmatprep.subr.mxu0 0.0
    %86 = vmatpush1.msra.mxu0 0.0
    %87 = vmatprep.subr.mxu0 0.0
    %88 = vmatpush1.msra.mxu0 0.0
    %89 = vmatprep.subr.mxu0 0.0
    %90 = vmatpush1.msra.mxu0 0.0
    %91 = vmatprep.subr.mxu0 0.0
    %92 = vmatpush1.msra.mxu0 0.0
    %93 = vmatprep.subr.mxu0 0.0
    %94 = vmatpush1.msra.mxu0 0.0
    %95 = vmatprep.subr.mxu0 0.0
    %96 = vmatpush1.msra.mxu0 0.0
    %97 = vmatprep.subr.mxu0 0.0
    %98 = vmatpush1.msra.mxu0 0.0
    %99 = vmatprep.subr.mxu0 0.0
    %100 = vmatpush1.msra.mxu0 0.0
    %101 = vmatprep.subr.mxu0 0.0
    %102 = vmatpush1.msra.mxu0 0.0
    %103 = vmatprep.subr.mxu0 0.0
    %104 = vmatpush1.msra.mxu0 0.0
    %105 = vmatprep.subr.mxu0 0.0
    %106 = vmatpush1.msra.mxu0 0.0
    %107 = vmatprep.subr.mxu0 0.0
    %108 = vmatpush1.msra.mxu0 0.0
    %109 = vmatprep.subr.mxu0 0.0
    %110 = vmatpush1.msra.mxu0 0.0
    %111 = vmatprep.subr.mxu0 0.0
    %112 = vmatpush1.msra.mxu0 0.0
    %113 = vmatprep.subr.mxu0 0.0
    %114 = vmatpush1.msra.mxu0 0.0
    %115 = vmatprep.subr.mxu0 0.0
    %116 = vmatpush1.msra.mxu0 0.0
    %117 = vmatprep.subr.mxu0 0.0
    %118 = vmatpush1.msra.mxu0 0.0
    %119 = vmatprep.subr.mxu0 0.0
    %120 = vmatpush1.msra.mxu0 0.0
    %121 = vmatprep.mubr.f32.mxu0 0.0
    %122 = vmatmul.mubr.f32.gmra.mrb[0].mxu0 %v55
    %v123 = vpop.f32.mrb[0].mxu0
    %v124 = vadd.f32 %v51, %v123
    %v125 = vpop.f32.mrb[0].mxu0
    %126 = vdwg.mxu0
    %vm127 = vcmask 80896
    %128 = vst.msk [vmem:[#allocation7] sm:$0xff] %vm127, %v124
    // Predicated region
    $region22: #{classifier_forward.1} parent=1 // pred_check
      _
    $region23: #{classifier_forward.1} parent=1 // pred_check_branch
      %130 = sbr.rel (0) target = $region25
    $region24: #{classifier_forward.1} parent=1 // pred_region
      %s132 = ssub.s32 128, 128
      %133 = vsyncadd [#allocation4], %s132
      %s135 = sshll.u32 [#allocation7], 4
      %s136 = int_to_ptr.vmem [resolvable:$true] %s135
      %138 = dma.vmem_to_hbm [thread:$0]  %s136, 128, %s3, [#allocation4]
    $region25: #{classifier_forward.1} parent=1 // pred_fallthru
      _
    // Predicated region
    $region26: #{classifier_forward.1} parent=1 // pred_check
      _
    $region27: #{classifier_forward.1} parent=1 // pred_check_branch
      %140 = sbr.rel (0) target = $region29
    $region28: #{classifier_forward.1} parent=1 // pred_region
      %141 = dma.done [#allocation4], 128
    $region29: #{classifier_forward.1} parent=1 // pred_fallthru
      _
    %142 = vsyncpa [#allocation3], 1
    %143 = vsyncpa [#allocation6], 1
    %144 = vsyncpa [#allocation4], 1

</llo_original>
